<compile_context>
chip_gen: v7x
topology: tpu7x:2x2x1
jax: 0.10.0
libtpu: 0.0.40
codegen_flags: <defaults>
</compile_context>

<pallas_src>
import functools

import jax
import jax.numpy as jnp
from jax.experimental import pallas as pl
from jax.experimental.pallas import tpu as pltpu


def _hardswish(x):
    # x * relu6(x + 3) / 6
    return x * jnp.clip(x + 3.0, 0.0, 6.0) * (1.0 / 6.0)


def _dsconv_kernel(x_ref, w_exp_ref, b_exp_ref, w_dw_ref, b_dw_ref,
                   w_prj_ref, b_prj_ref, m_ref, *rest, H, W, stride):
    """Fused expand(1x1)+BN+hswish -> depthwise(3x3)+BN+hswish -> project(1x1)+BN
    for one batch element, channels-major / spatial-on-lanes layout."""
    if stride == 1:
        (o_ref,) = rest
        sel_ref = None
    else:
        sel_ref, o_ref = rest

    HW = H * W
    x = x_ref[0]                                            # (Cin, HW)

    # ---- expand: 1x1 conv == (Cexp,Cin)x(Cin,HW) matmul, BN scale pre-folded
    y = jnp.dot(w_exp_ref[...], x, preferred_element_type=jnp.float32)
    y = _hardswish(y + b_exp_ref[...])                      # (Cexp, HW)

    # ---- depthwise 3x3, padding=1: 8 lane-rolls + boundary masks + taps ----
    acc = y * w_dw_ref[4]                                   # center tap, no mask
    for dh in (-1, 0, 1):
        for dw in (-1, 0, 1):
            if dh == 0 and dw == 0:
                continue
            k = (dh + 1) * 3 + (dw + 1)
            off = dh * W + dw                               # flat-index offset
            shifted = pltpu.roll(y, (-off) % HW, axis=1)    # shifted[p] = y[p+off]
            acc = acc + shifted * m_ref[k] * w_dw_ref[k]
    if stride != 1:
        # Subsample the stride-1 result at the strided centers (selection matmul).
        acc = jnp.dot(acc, sel_ref[...], preferred_element_type=jnp.float32)
    z = _hardswish(acc + b_dw_ref[...])                     # (Cexp, Ho*Wo)

    # ---- project: 1x1 conv == (Cout,Cexp)x(Cexp,HoWo) matmul, BN folded ----
    out = jnp.dot(w_prj_ref[...], z, preferred_element_type=jnp.float32)
    o_ref[0] = out + b_prj_ref[...]                         # (Cout, Ho*Wo)


def _dw_boundary_masks(H, W):
    """(9, 1, H*W) float 0/1 masks: tap (kh,kw) valid at flat position p."""
    r = jnp.repeat(jnp.arange(H), W)
    c = jnp.tile(jnp.arange(W), H)
    masks = []
    for dh in (-1, 0, 1):
        for dw in (-1, 0, 1):
            ok = (r + dh >= 0) & (r + dh < H) & (c + dw >= 0) & (c + dw < W)
            masks.append(ok)
    return jnp.stack(masks).astype(jnp.float32).reshape(9, 1, H * W)


def _subsample_matrix(H, W, stride, Ho, Wo):
    """(H*W, Ho*Wo) selection matrix picking the strided conv centers."""
    src = (jnp.arange(Ho)[:, None] * stride) * W + jnp.arange(Wo)[None, :] * stride
    src = src.reshape(-1)
    return jnp.zeros((H * W, Ho * Wo), jnp.float32).at[
        src, jnp.arange(Ho * Wo)].set(1.0)


def depthwise_separable_conv(x_nchw, p, stride):
    N, Cin, H, W = x_nchw.shape
    Cexp = p["w_exp"].shape[0]
    Cout = p["w_prj"].shape[0]
    Ho = (H + 2 - 3) // stride + 1
    Wo = (W + 2 - 3) // stride + 1
    HW, HoWo = H * W, Ho * Wo

    x = x_nchw.reshape(N, Cin, HW)               # free reshape, stays NCHW-major
    masks = _dw_boundary_masks(H, W)

    args = [x, p["w_exp"], p["b_exp"], p["w_dw"], p["b_dw"],
            p["w_prj"], p["b_prj"], masks]
    in_specs = [
        pl.BlockSpec((1, Cin, HW), lambda n: (n, 0, 0)),
        pl.BlockSpec((Cexp, Cin), lambda n: (0, 0)),
        pl.BlockSpec((Cexp, 1), lambda n: (0, 0)),
        pl.BlockSpec((9, Cexp, 1), lambda n: (0, 0, 0)),
        pl.BlockSpec((Cexp, 1), lambda n: (0, 0)),
        pl.BlockSpec((Cout, Cexp), lambda n: (0, 0)),
        pl.BlockSpec((Cout, 1), lambda n: (0, 0)),
        pl.BlockSpec((9, 1, HW), lambda n: (0, 0, 0)),
    ]
    if stride != 1:
        args.append(_subsample_matrix(H, W, stride, Ho, Wo))
        in_specs.append(pl.BlockSpec((HW, HoWo), lambda n: (0, 0)))

    flops = N * (2 * HW * Cin * Cexp + 18 * HW * Cexp + 2 * HoWo * Cexp * Cout)
    if stride != 1:
        flops += N * 2 * HW * HoWo * Cexp
    bytes_accessed = int(sum(4 * a.size for a in args) + 4 * N * Cout * HoWo)

    kernel = functools.partial(_dsconv_kernel, H=H, W=W, stride=stride)
    out = pl.pallas_call(
        kernel,
        out_shape=jax.ShapeDtypeStruct((N, Cout, HoWo), jnp.float32),
        grid_spec=pltpu.PrefetchScalarGridSpec(
            num_scalar_prefetch=0,
            grid=(N,),
            in_specs=in_specs,
            out_specs=pl.BlockSpec((1, Cout, HoWo), lambda n: (n, 0, 0)),
        ),
        compiler_params=pltpu.CompilerParams(
            dimension_semantics=("parallel",),
            vmem_limit_bytes=64 * 1024 * 1024),
        cost_estimate=pl.CostEstimate(flops=flops, transcendentals=0,
                                      bytes_accessed=bytes_accessed),
    )(*args)

    return out.reshape(N, Cout, Ho, Wo)          # free reshape, NCHW output


def ref_forward(x, p, stride):
    """Plain-JAX NCHW reference using lax.conv_general_dilated (same folded params)."""
    hsw = lambda v: v * jnp.clip(v + 3.0, 0.0, 6.0) / 6.0
    cvec = lambda b: b[:, 0][None, :, None, None]

    w1 = p["w_exp"][:, :, None, None]                        # (Cexp, Cin, 1, 1)
    y = jax.lax.conv_general_dilated(
        x, w1, (1, 1), "VALID", dimension_numbers=("NCHW", "OIHW", "NCHW"))
    y = hsw(y + cvec(p["b_exp"]))

    wd = p["w_dw"][:, :, 0].T.reshape(-1, 1, 3, 3)           # (Cexp, 1, 3, 3)
    z = jax.lax.conv_general_dilated(
        y, wd, (stride, stride), ((1, 1), (1, 1)),
        dimension_numbers=("NCHW", "OIHW", "NCHW"),
        feature_group_count=y.shape[1])
    z = hsw(z + cvec(p["b_dw"]))

    w2 = p["w_prj"][:, :, None, None]                        # (Cout, Cexp, 1, 1)
    o = jax.lax.conv_general_dilated(
        z, w2, (1, 1), "VALID", dimension_numbers=("NCHW", "OIHW", "NCHW"))
    return o + cvec(p["b_prj"])


def make_params(key, Cin, Cexp, Cout):
    """Random conv + BN params with inference-mode BN folded on the host.
       w_exp:(Cexp,Cin) b_exp:(Cexp,1)  w_dw:(9,Cexp,1) b_dw:(Cexp,1)
       w_prj:(Cout,Cexp) b_prj:(Cout,1)   (depthwise tap index k = kh*3 + kw)"""
    ks = jax.random.split(key, 18)
    nrm = lambda k, s, scale=0.1: scale * jax.random.normal(k, s, jnp.float32)

    def bn_fold(k0, C, eps=1e-5):
        gamma = 1.0 + nrm(ks[k0], (C,))
        beta = nrm(ks[k0 + 1], (C,))
        mean = nrm(ks[k0 + 2], (C,))
        var = 1.0 + jnp.abs(nrm(ks[k0 + 3], (C,)))
        scale = gamma / jnp.sqrt(var + eps)
        return scale, beta - scale * mean

    # expand 1x1 (torch weight (Cexp, Cin, 1, 1) + bias) -> folded
    w1, bias1 = nrm(ks[0], (Cexp, Cin)), nrm(ks[1], (Cexp,))
    s1, sh1 = bn_fold(2, Cexp)
    w_exp = w1 * s1[:, None]
    b_exp = (s1 * bias1 + sh1)[:, None]

    # depthwise 3x3 (torch weight (Cexp, 1, 3, 3) + bias) -> folded
    wd, biasd = nrm(ks[6], (Cexp, 3, 3)), nrm(ks[7], (Cexp,))
    sd, shd = bn_fold(8, Cexp)
    w_dw = (wd * sd[:, None, None]).reshape(Cexp, 9).T[:, :, None]   # (9, Cexp, 1)
    b_dw = (sd * biasd + shd)[:, None]

    # project 1x1 (torch weight (Cout, Cexp, 1, 1) + bias) -> folded
    w2, bias2 = nrm(ks[12], (Cout, Cexp)), nrm(ks[13], (Cout,))
    s2, sh2 = bn_fold(14, Cout)
    w_prj = w2 * s2[:, None]
    b_prj = (s2 * bias2 + sh2)[:, None]

    return dict(w_exp=w_exp, b_exp=b_exp, w_dw=w_dw, b_dw=b_dw,
                w_prj=w_prj, b_prj=b_prj)


if __name__ == "__main__":
    key = jax.random.PRNGKey(0)
    kx, kp = jax.random.split(key)

    N, Cin, H, W = 2, 4, 16, 16
    expansion_factor, Cout = 2, 8
    Cexp = Cin * expansion_factor

    params = make_params(kp, Cin, Cexp, Cout)
    x = jax.random.normal(kx, (N, Cin, H, W), jnp.float32)

    for stride in (1, 2):
        out = jax.block_until_ready(depthwise_separable_conv(x, params, stride))
        ref = ref_forward(x, params, stride)
        Ho = (H + 2 - 3) // stride + 1
        assert out.shape == ref.shape == (N, Cout, Ho, Ho), (out.shape, ref.shape)
        err = float(jnp.max(jnp.abs(out - ref)))
        assert jnp.allclose(out, ref, rtol=1e-4, atol=1e-4), \
            f"stride={stride} max err {err}"
    print("KERNEL_OK")
</pallas_src>

<mosaic_0001>
module attributes {stable_mosaic.version = 11 : i64} {
  func.func @_dsconv_kernel(%arg0: i32, %arg1: memref<1x4x256xf32, #tpu.memory_space<vmem>>, %arg2: memref<8x4xf32, #tpu.memory_space<vmem>>, %arg3: memref<8x1xf32, #tpu.memory_space<vmem>>, %arg4: memref<9x8x1xf32, #tpu.memory_space<vmem>>, %arg5: memref<8x1xf32, #tpu.memory_space<vmem>>, %arg6: memref<8x8xf32, #tpu.memory_space<vmem>>, %arg7: memref<8x1xf32, #tpu.memory_space<vmem>>, %arg8: memref<9x1x256xf32, #tpu.memory_space<vmem>>, %arg9: memref<1x8x256xf32, #tpu.memory_space<vmem>>) attributes {dimension_semantics = [#tpu.dimension_semantics<parallel>], iteration_bounds = array<i64: 2>, scalar_prefetch = 0 : i64, scratch_operands = 0 : i64, tpu.core_type = #tpu.core_type<tc>, window_params = [{transform_indices = @transform_0, window_bounds = array<i64: 1, 4, 256>}, {pipeline_mode = #tpu.pipeline_mode<synchronous>, transform_indices = @transform_1, window_bounds = array<i64: 8, 4>}, {pipeline_mode = #tpu.pipeline_mode<synchronous>, transform_indices = @transform_2, window_bounds = array<i64: 8, 1>}, {pipeline_mode = #tpu.pipeline_mode<synchronous>, transform_indices = @transform_3, window_bounds = array<i64: 9, 8, 1>}, {pipeline_mode = #tpu.pipeline_mode<synchronous>, transform_indices = @transform_4, window_bounds = array<i64: 8, 1>}, {pipeline_mode = #tpu.pipeline_mode<synchronous>, transform_indices = @transform_5, window_bounds = array<i64: 8, 8>}, {pipeline_mode = #tpu.pipeline_mode<synchronous>, transform_indices = @transform_6, window_bounds = array<i64: 8, 1>}, {pipeline_mode = #tpu.pipeline_mode<synchronous>, transform_indices = @transform_7, window_bounds = array<i64: 9, 1, 256>}, {transform_indices = @transform_8, window_bounds = array<i64: 1, 8, 256>}]} {
    %c0 = arith.constant 0 : index
    %c0_0 = arith.constant 0 : index
    %c0_1 = arith.constant 0 : index
    %0 = vector.load %arg1[%c0, %c0_0, %c0_1] : memref<1x4x256xf32, #tpu.memory_space<vmem>>, vector<1x4x256xf32>
    %1 = vector.shape_cast %0 : vector<1x4x256xf32> to vector<4x256xf32>
    %c0_2 = arith.constant 0 : index
    %c0_3 = arith.constant 0 : index
    %2 = vector.load %arg2[%c0_2, %c0_3] : memref<8x4xf32, #tpu.memory_space<vmem>>, vector<8x4xf32>
    %cst = arith.constant dense<0.000000e+00> : vector<8x256xf32>
    %3 = tpu.matmul %2, %1, %cst {dimension_numbers = #tpu.dot_dimension_numbers<[1], [0], [0], [1], [0, 0, 1, 1], [], []>} : vector<8x4xf32>, vector<4x256xf32>, vector<8x256xf32> -> vector<8x256xf32>
    %c0_4 = arith.constant 0 : index
    %c0_5 = arith.constant 0 : index
    %4 = vector.load %arg3[%c0_4, %c0_5] : memref<8x1xf32, #tpu.memory_space<vmem>>, vector<8x1xf32>
    %5 = vector.broadcast %4 : vector<8x1xf32> to vector<8x256xf32>
    %6 = arith.addf %3, %5 : vector<8x256xf32>
    %cst_6 = arith.constant 3.000000e+00 : f32
    %7 = vector.broadcast %cst_6 : f32 to vector<8x256xf32>
    %8 = arith.addf %6, %7 : vector<8x256xf32>
    %cst_7 = arith.constant 0.000000e+00 : f32
    %cst_8 = arith.constant 6.000000e+00 : f32
    %9 = vector.broadcast %cst_7 : f32 to vector<8x256xf32>
    %10 = arith.maximumf %9, %8 : vector<8x256xf32>
    %11 = vector.broadcast %cst_8 : f32 to vector<8x256xf32>
    %12 = arith.minimumf %11, %10 : vector<8x256xf32>
    %13 = arith.mulf %6, %12 : vector<8x256xf32>
    %cst_9 = arith.constant 0.166666672 : f32
    %14 = vector.broadcast %cst_9 : f32 to vector<8x256xf32>
    %15 = arith.mulf %13, %14 : vector<8x256xf32>
    %c4 = arith.constant 4 : index
    %c0_10 = arith.constant 0 : index
    %c0_11 = arith.constant 0 : index
    %16 = vector.load %arg4[%c4, %c0_10, %c0_11] : memref<9x8x1xf32, #tpu.memory_space<vmem>>, vector<1x8x1xf32>
    %17 = vector.shape_cast %16 : vector<1x8x1xf32> to vector<8x1xf32>
    %18 = vector.broadcast %17 : vector<8x1xf32> to vector<8x256xf32>
    %19 = arith.mulf %15, %18 : vector<8x256xf32>
    %c17_i32 = arith.constant 17 : i32
    %20 = tpu.dynamic_rotate %15 by %c17_i32 dim 1 : vector<8x256xf32>, i32 -> vector<8x256xf32>
    %c0_12 = arith.constant 0 : index
    %c0_13 = arith.constant 0 : index
    %c0_14 = arith.constant 0 : index
    %21 = vector.load %arg8[%c0_12, %c0_13, %c0_14] : memref<9x1x256xf32, #tpu.memory_space<vmem>>, vector<1x1x256xf32>
    %22 = vector.shape_cast %21 : vector<1x1x256xf32> to vector<1x256xf32>
    %23 = vector.broadcast %22 : vector<1x256xf32> to vector<8x256xf32>
    %24 = arith.mulf %20, %23 : vector<8x256xf32>
    %c0_15 = arith.constant 0 : index
    %c0_16 = arith.constant 0 : index
    %c0_17 = arith.constant 0 : index
    %25 = vector.load %arg4[%c0_15, %c0_16, %c0_17] : memref<9x8x1xf32, #tpu.memory_space<vmem>>, vector<1x8x1xf32>
    %26 = vector.shape_cast %25 : vector<1x8x1xf32> to vector<8x1xf32>
    %27 = vector.broadcast %26 : vector<8x1xf32> to vector<8x256xf32>
    %28 = arith.mulf %24, %27 : vector<8x256xf32>
    %29 = arith.addf %19, %28 : vector<8x256xf32>
    %c16_i32 = arith.constant 16 : i32
    %30 = tpu.dynamic_rotate %15 by %c16_i32 dim 1 : vector<8x256xf32>, i32 -> vector<8x256xf32>
    %c1 = arith.constant 1 : index
    %c0_18 = arith.constant 0 : index
    %c0_19 = arith.constant 0 : index
    %31 = vector.load %arg8[%c1, %c0_18, %c0_19] : memref<9x1x256xf32, #tpu.memory_space<vmem>>, vector<1x1x256xf32>
    %32 = vector.shape_cast %31 : vector<1x1x256xf32> to vector<1x256xf32>
    %33 = vector.broadcast %32 : vector<1x256xf32> to vector<8x256xf32>
    %34 = arith.mulf %30, %33 : vector<8x256xf32>
    %c1_20 = arith.constant 1 : index
    %c0_21 = arith.constant 0 : index
    %c0_22 = arith.constant 0 : index
    %35 = vector.load %arg4[%c1_20, %c0_21, %c0_22] : memref<9x8x1xf32, #tpu.memory_space<vmem>>, vector<1x8x1xf32>
    %36 = vector.shape_cast %35 : vector<1x8x1xf32> to vector<8x1xf32>
    %37 = vector.broadcast %36 : vector<8x1xf32> to vector<8x256xf32>
    %38 = arith.mulf %34, %37 : vector<8x256xf32>
    %39 = arith.addf %29, %38 : vector<8x256xf32>
    %c15_i32 = arith.constant 15 : i32
    %40 = tpu.dynamic_rotate %15 by %c15_i32 dim 1 : vector<8x256xf32>, i32 -> vector<8x256xf32>
    %c2 = arith.constant 2 : index
    %c0_23 = arith.constant 0 : index
    %c0_24 = arith.constant 0 : index
    %41 = vector.load %arg8[%c2, %c0_23, %c0_24] : memref<9x1x256xf32, #tpu.memory_space<vmem>>, vector<1x1x256xf32>
    %42 = vector.shape_cast %41 : vector<1x1x256xf32> to vector<1x256xf32>
    %43 = vector.broadcast %42 : vector<1x256xf32> to vector<8x256xf32>
    %44 = arith.mulf %40, %43 : vector<8x256xf32>
    %c2_25 = arith.constant 2 : index
    %c0_26 = arith.constant 0 : index
    %c0_27 = arith.constant 0 : index
    %45 = vector.load %arg4[%c2_25, %c0_26, %c0_27] : memref<9x8x1xf32, #tpu.memory_space<vmem>>, vector<1x8x1xf32>
    %46 = vector.shape_cast %45 : vector<1x8x1xf32> to vector<8x1xf32>
    %47 = vector.broadcast %46 : vector<8x1xf32> to vector<8x256xf32>
    %48 = arith.mulf %44, %47 : vector<8x256xf32>
    %49 = arith.addf %39, %48 : vector<8x256xf32>
    %c1_i32 = arith.constant 1 : i32
    %50 = tpu.dynamic_rotate %15 by %c1_i32 dim 1 : vector<8x256xf32>, i32 -> vector<8x256xf32>
    %c3 = arith.constant 3 : index
    %c0_28 = arith.constant 0 : index
    %c0_29 = arith.constant 0 : index
    %51 = vector.load %arg8[%c3, %c0_28, %c0_29] : memref<9x1x256xf32, #tpu.memory_space<vmem>>, vector<1x1x256xf32>
    %52 = vector.shape_cast %51 : vector<1x1x256xf32> to vector<1x256xf32>
    %53 = vector.broadcast %52 : vector<1x256xf32> to vector<8x256xf32>
    %54 = arith.mulf %50, %53 : vector<8x256xf32>
    %c3_30 = arith.constant 3 : index
    %c0_31 = arith.constant 0 : index
    %c0_32 = arith.constant 0 : index
    %55 = vector.load %arg4[%c3_30, %c0_31, %c0_32] : memref<9x8x1xf32, #tpu.memory_space<vmem>>, vector<1x8x1xf32>
    %56 = vector.shape_cast %55 : vector<1x8x1xf32> to vector<8x1xf32>
    %57 = vector.broadcast %56 : vector<8x1xf32> to vector<8x256xf32>
    %58 = arith.mulf %54, %57 : vector<8x256xf32>
    %59 = arith.addf %49, %58 : vector<8x256xf32>
    %c255_i32 = arith.constant 255 : i32
    %60 = tpu.dynamic_rotate %15 by %c255_i32 dim 1 : vector<8x256xf32>, i32 -> vector<8x256xf32>
    %c5 = arith.constant 5 : index
    %c0_33 = arith.constant 0 : index
    %c0_34 = arith.constant 0 : index
    %61 = vector.load %arg8[%c5, %c0_33, %c0_34] : memref<9x1x256xf32, #tpu.memory_space<vmem>>, vector<1x1x256xf32>
    %62 = vector.shape_cast %61 : vector<1x1x256xf32> to vector<1x256xf32>
    %63 = vector.broadcast %62 : vector<1x256xf32> to vector<8x256xf32>
    %64 = arith.mulf %60, %63 : vector<8x256xf32>
    %c5_35 = arith.constant 5 : index
    %c0_36 = arith.constant 0 : index
    %c0_37 = arith.constant 0 : index
    %65 = vector.load %arg4[%c5_35, %c0_36, %c0_37] : memref<9x8x1xf32, #tpu.memory_space<vmem>>, vector<1x8x1xf32>
    %66 = vector.shape_cast %65 : vector<1x8x1xf32> to vector<8x1xf32>
    %67 = vector.broadcast %66 : vector<8x1xf32> to vector<8x256xf32>
    %68 = arith.mulf %64, %67 : vector<8x256xf32>
    %69 = arith.addf %59, %68 : vector<8x256xf32>
    %c241_i32 = arith.constant 241 : i32
    %70 = tpu.dynamic_rotate %15 by %c241_i32 dim 1 : vector<8x256xf32>, i32 -> vector<8x256xf32>
    %c6 = arith.constant 6 : index
    %c0_38 = arith.constant 0 : index
    %c0_39 = arith.constant 0 : index
    %71 = vector.load %arg8[%c6, %c0_38, %c0_39] : memref<9x1x256xf32, #tpu.memory_space<vmem>>, vector<1x1x256xf32>
    %72 = vector.shape_cast %71 : vector<1x1x256xf32> to vector<1x256xf32>
    %73 = vector.broadcast %72 : vector<1x256xf32> to vector<8x256xf32>
    %74 = arith.mulf %70, %73 : vector<8x256xf32>
    %c6_40 = arith.constant 6 : index
    %c0_41 = arith.constant 0 : index
    %c0_42 = arith.constant 0 : index
    %75 = vector.load %arg4[%c6_40, %c0_41, %c0_42] : memref<9x8x1xf32, #tpu.memory_space<vmem>>, vector<1x8x1xf32>
    %76 = vector.shape_cast %75 : vector<1x8x1xf32> to vector<8x1xf32>
    %77 = vector.broadcast %76 : vector<8x1xf32> to vector<8x256xf32>
    %78 = arith.mulf %74, %77 : vector<8x256xf32>
    %79 = arith.addf %69, %78 : vector<8x256xf32>
    %c240_i32 = arith.constant 240 : i32
    %80 = tpu.dynamic_rotate %15 by %c240_i32 dim 1 : vector<8x256xf32>, i32 -> vector<8x256xf32>
    %c7 = arith.constant 7 : index
    %c0_43 = arith.constant 0 : index
    %c0_44 = arith.constant 0 : index
    %81 = vector.load %arg8[%c7, %c0_43, %c0_44] : memref<9x1x256xf32, #tpu.memory_space<vmem>>, vector<1x1x256xf32>
    %82 = vector.shape_cast %81 : vector<1x1x256xf32> to vector<1x256xf32>
    %83 = vector.broadcast %82 : vector<1x256xf32> to vector<8x256xf32>
    %84 = arith.mulf %80, %83 : vector<8x256xf32>
    %c7_45 = arith.constant 7 : index
    %c0_46 = arith.constant 0 : index
    %c0_47 = arith.constant 0 : index
    %85 = vector.load %arg4[%c7_45, %c0_46, %c0_47] : memref<9x8x1xf32, #tpu.memory_space<vmem>>, vector<1x8x1xf32>
    %86 = vector.shape_cast %85 : vector<1x8x1xf32> to vector<8x1xf32>
    %87 = vector.broadcast %86 : vector<8x1xf32> to vector<8x256xf32>
    %88 = arith.mulf %84, %87 : vector<8x256xf32>
    %89 = arith.addf %79, %88 : vector<8x256xf32>
    %c239_i32 = arith.constant 239 : i32
    %90 = tpu.dynamic_rotate %15 by %c239_i32 dim 1 : vector<8x256xf32>, i32 -> vector<8x256xf32>
    %c8 = arith.constant 8 : index
    %c0_48 = arith.constant 0 : index
    %c0_49 = arith.constant 0 : index
    %91 = vector.load %arg8[%c8, %c0_48, %c0_49] : memref<9x1x256xf32, #tpu.memory_space<vmem>>, vector<1x1x256xf32>
    %92 = vector.shape_cast %91 : vector<1x1x256xf32> to vector<1x256xf32>
    %93 = vector.broadcast %92 : vector<1x256xf32> to vector<8x256xf32>
    %94 = arith.mulf %90, %93 : vector<8x256xf32>
    %c8_50 = arith.constant 8 : index
    %c0_51 = arith.constant 0 : index
    %c0_52 = arith.constant 0 : index
    %95 = vector.load %arg4[%c8_50, %c0_51, %c0_52] : memref<9x8x1xf32, #tpu.memory_space<vmem>>, vector<1x8x1xf32>
    %96 = vector.shape_cast %95 : vector<1x8x1xf32> to vector<8x1xf32>
    %97 = vector.broadcast %96 : vector<8x1xf32> to vector<8x256xf32>
    %98 = arith.mulf %94, %97 : vector<8x256xf32>
    %99 = arith.addf %89, %98 : vector<8x256xf32>
    %c0_53 = arith.constant 0 : index
    %c0_54 = arith.constant 0 : index
    %100 = vector.load %arg5[%c0_53, %c0_54] : memref<8x1xf32, #tpu.memory_space<vmem>>, vector<8x1xf32>
    %101 = vector.broadcast %100 : vector<8x1xf32> to vector<8x256xf32>
    %102 = arith.addf %99, %101 : vector<8x256xf32>
    %cst_55 = arith.constant 3.000000e+00 : f32
    %103 = vector.broadcast %cst_55 : f32 to vector<8x256xf32>
    %104 = arith.addf %102, %103 : vector<8x256xf32>
    %cst_56 = arith.constant 0.000000e+00 : f32
    %cst_57 = arith.constant 6.000000e+00 : f32
    %105 = vector.broadcast %cst_56 : f32 to vector<8x256xf32>
    %106 = arith.maximumf %105, %104 : vector<8x256xf32>
    %107 = vector.broadcast %cst_57 : f32 to vector<8x256xf32>
    %108 = arith.minimumf %107, %106 : vector<8x256xf32>
    %109 = arith.mulf %102, %108 : vector<8x256xf32>
    %cst_58 = arith.constant 0.166666672 : f32
    %110 = vector.broadcast %cst_58 : f32 to vector<8x256xf32>
    %111 = arith.mulf %109, %110 : vector<8x256xf32>
    %c0_59 = arith.constant 0 : index
    %c0_60 = arith.constant 0 : index
    %112 = vector.load %arg6[%c0_59, %c0_60] : memref<8x8xf32, #tpu.memory_space<vmem>>, vector<8x8xf32>
    %cst_61 = arith.constant dense<0.000000e+00> : vector<8x256xf32>
    %113 = tpu.matmul %112, %111, %cst_61 {dimension_numbers = #tpu.dot_dimension_numbers<[1], [0], [0], [1], [0, 0, 1, 1], [], []>} : vector<8x8xf32>, vector<8x256xf32>, vector<8x256xf32> -> vector<8x256xf32>
    %c0_62 = arith.constant 0 : index
    %c0_63 = arith.constant 0 : index
    %114 = vector.load %arg7[%c0_62, %c0_63] : memref<8x1xf32, #tpu.memory_space<vmem>>, vector<8x1xf32>
    %115 = vector.broadcast %114 : vector<8x1xf32> to vector<8x256xf32>
    %116 = arith.addf %113, %115 : vector<8x256xf32>
    %c0_64 = arith.constant 0 : index
    %c0_65 = arith.constant 0 : index
    %c0_66 = arith.constant 0 : index
    %117 = vector.load %arg9[%c0_64, %c0_65, %c0_66] : memref<1x8x256xf32, #tpu.memory_space<vmem>>, vector<1x8x256xf32>
    %118 = vector.shape_cast %117 : vector<1x8x256xf32> to vector<8x256xf32>
    %119 = vector.shape_cast %116 : vector<8x256xf32> to vector<1x8x256xf32>
    tpu.vector_store %arg9[%c0_64, %c0_65, %c0_66], %119 {strides = array<i32>} : memref<1x8x256xf32, #tpu.memory_space<vmem>>, vector<1x8x256xf32>,
    return
  }
  func.func @transform_0(%arg0: i32) -> (i32, i32, i32) {
    %c0_i32 = arith.constant 0 : i32
    %c0_i32_0 = arith.constant 0 : i32
    %c0_i32_1 = arith.constant 0 : i32
    return %arg0, %c0_i32, %c0_i32_0 : i32, i32, i32
  }
  func.func @transform_1(%arg0: i32) -> (i32, i32) {
    %c0_i32 = arith.constant 0 : i32
    %c0_i32_0 = arith.constant 0 : i32
    %c0_i32_1 = arith.constant 0 : i32
    return %c0_i32, %c0_i32_0 : i32, i32
  }
  func.func @transform_2(%arg0: i32) -> (i32, i32) {
    %c0_i32 = arith.constant 0 : i32
    %c0_i32_0 = arith.constant 0 : i32
    %c0_i32_1 = arith.constant 0 : i32
    return %c0_i32, %c0_i32_0 : i32, i32
  }
  func.func @transform_3(%arg0: i32) -> (i32, i32, i32) {
    %c0_i32 = arith.constant 0 : i32
    %c0_i32_0 = arith.constant 0 : i32
    %c0_i32_1 = arith.constant 0 : i32
    %c0_i32_2 = arith.constant 0 : i32
    return %c0_i32, %c0_i32_0, %c0_i32_1 : i32, i32, i32
  }
  func.func @transform_4(%arg0: i32) -> (i32, i32) {
    %c0_i32 = arith.constant 0 : i32
    %c0_i32_0 = arith.constant 0 : i32
    %c0_i32_1 = arith.constant 0 : i32
    return %c0_i32, %c0_i32_0 : i32, i32
  }
  func.func @transform_5(%arg0: i32) -> (i32, i32) {
    %c0_i32 = arith.constant 0 : i32
    %c0_i32_0 = arith.constant 0 : i32
    %c0_i32_1 = arith.constant 0 : i32
    return %c0_i32, %c0_i32_0 : i32, i32
  }
  func.func @transform_6(%arg0: i32) -> (i32, i32) {
    %c0_i32 = arith.constant 0 : i32
    %c0_i32_0 = arith.constant 0 : i32
    %c0_i32_1 = arith.constant 0 : i32
    return %c0_i32, %c0_i32_0 : i32, i32
  }
  func.func @transform_7(%arg0: i32) -> (i32, i32, i32) {
    %c0_i32 = arith.constant 0 : i32
    %c0_i32_0 = arith.constant 0 : i32
    %c0_i32_1 = arith.constant 0 : i32
    %c0_i32_2 = arith.constant 0 : i32
    return %c0_i32, %c0_i32_0, %c0_i32_1 : i32, i32, i32
  }
  func.func @transform_8(%arg0: i32) -> (i32, i32, i32) {
    %c0_i32 = arith.constant 0 : i32
    %c0_i32_0 = arith.constant 0 : i32
    %c0_i32_1 = arith.constant 0 : i32
    return %arg0, %c0_i32, %c0_i32_0 : i32, i32, i32
  }
}

</mosaic_0001>

<llo_original>
// kernel: tpu_custom_call.1
$region0: #{tpu_custom_call.1}
  #allocation0 [shape = 'u32[]', space=smem, size = 0x4, offset = 0x4, fixed_abs, tag = 'smem constant byte address 0x4 - core index']
  #allocation1 [shape = 'u32[144,128]{1,0:T(1,128)}', space=vmem, size = 0x12000, scoped, tag = 'internal scratch']
  %s0 = inlined_call_operand.hbm [shape: f32[2,4,256], index: 0, kind: input, shape index: {}]
  %s1 = inlined_call_operand.hbm [shape: f32[8,4], index: 1, kind: input, shape index: {}]
  %s2 = inlined_call_operand.hbm [shape: f32[8,1], index: 2, kind: input, shape index: {}]
  %s3 = inlined_call_operand.hbm [shape: f32[9,8,1], index: 3, kind: input, shape index: {}]
  %s4 = inlined_call_operand.hbm [shape: f32[8,1], index: 4, kind: input, shape index: {}]
  %s5 = inlined_call_operand.hbm [shape: f32[8,8], index: 5, kind: input, shape index: {}]
  %s6 = inlined_call_operand.hbm [shape: f32[8,1], index: 6, kind: input, shape index: {}]
  %s7 = inlined_call_operand.hbm [shape: f32[9,1,256], index: 7, kind: input, shape index: {}]
  %s8 = inlined_call_operand.hbm [shape: f32[2,8,256], index: 8, kind: output, shape index: {}]
  %s9 = sld [smem:[#allocation0]]
  $region97: #{tpu_custom_call.1} parent=0
    _
  %s11 = ssub.s32 1, %s9
  %s12 = scalar_select 0, %s11, %s9
  $region1: #{tpu_custom_call.1} parent=0
    #allocation2 [shape = 'u8[8192]{0}', space=vmem, size = 0x2000, scoped, tag = 'input window, operand 0']
    #allocation3 [shape = 's32[2]{0}', space=sflag, size = 0x8, scoped, tag = 'scoped memory for tpu_custom_call.1']
    #allocation4 [shape = 's32[2]{0}', space=sflag, size = 0x8, scoped, tag = 'scoped memory for tpu_custom_call.1']
    #allocation5 [shape = 'u8[4096]{0}', space=vmem, size = 0x1000, scoped, tag = 'input window, operand 1, single buffered']
    #allocation6 [shape = 's32[1]{0}', space=sflag, size = 0x4, scoped, tag = 'scoped memory for tpu_custom_call.1']
    #allocation7 [shape = 'u8[4096]{0}', space=vmem, size = 0x1000, scoped, tag = 'input window, operand 2, single buffered']
    #allocation8 [shape = 'u8[36864]{0}', space=vmem, size = 0x9000, scoped, tag = 'input window, operand 3, single buffered']
    #allocation9 [shape = 's32[1]{0}', space=sflag, size = 0x4, scoped, tag = 'scoped memory for tpu_custom_call.1']
    #allocation10 [shape = 'u8[4096]{0}', space=vmem, size = 0x1000, scoped, tag = 'input window, operand 4, single buffered']
    #allocation11 [shape = 'u8[4096]{0}', space=vmem, size = 0x1000, scoped, tag = 'input window, operand 5, single buffered']
    #allocation12 [shape = 's32[1]{0}', space=sflag, size = 0x4, scoped, tag = 'scoped memory for tpu_custom_call.1']
    #allocation13 [shape = 'u8[4096]{0}', space=vmem, size = 0x1000, scoped, tag = 'input window, operand 6, single buffered']
    #allocation14 [shape = 'u8[9216]{0}', space=vmem, size = 0x2400, scoped, tag = 'input window, operand 7, single buffered']
    #allocation15 [shape = 's32[1]{0}', space=sflag, size = 0x4, scoped, tag = 'scoped memory for tpu_custom_call.1']
    #allocation16 [shape = 'u8[16384]{0}', space=vmem, size = 0x4000, scoped, tag = 'output window, operand 0']
    %13 = vsyncpa [#allocation3], 0
    %s14 = scalar_lea.sflag [#allocation3], 1
    %15 = vsyncpa %s14, 0
    %16 = vsyncpa [#allocation6], 0
    %17 = vsyncpa [#allocation9], 0
    %18 = vsyncpa [#allocation12], 0
    %19 = vsyncpa [#allocation15], 0
    %20 = vsyncpa [#allocation4], 0
    %s21 = scalar_lea.sflag [#allocation4], 1
    %22 = vsyncpa %s21, 0
    loop: start=0, step=1, limit=4
    $region2: #{tpu_custom_call.1} parent=1 // loop_pre_header
      _
    $region3: #{tpu_custom_call.1} parent=1 // loop_header
      %s24 = sphi 0, %s28
      %p25 = scmp.ge.s32.totalorder %s24, 4
      %s34 = sphi 0, %s36
      %s37 = sphi 0, %s34
      %s38 = sphi 0, %s37
      %s54 = sphi 0, %s38
      %s58 = sphi 0, %s58
      %s60 = sphi 0, %s58
      %s61 = sphi 0, %s60
      %s75 = sphi 0, %s61
      %s79 = sphi 0, %s79
      %s81 = sphi 0, %s79
      %s82 = sphi 0, %s81
      %s96 = sphi 0, %s82
      %s100 = sphi 0, %s100
      %s102 = sphi 0, %s100
      %s103 = sphi 0, %s102
      %s117 = sphi 0, %s103
      %s121 = sphi 0, %s121
      %s123 = sphi 0, %s121
      %s124 = sphi 0, %s123
      %s138 = sphi 0, %s124
      %s142 = sphi 0, %s142
      %s144 = sphi 0, %s142
      %s145 = sphi 0, %s144
      %s159 = sphi 0, %s145
      %s163 = sphi 0, %s163
      %s165 = sphi 0, %s163
      %s166 = sphi 0, %s165
      %s180 = sphi 0, %s166
      %s184 = sphi 0, %s184
      %s186 = sphi 0, %s184
      %s187 = sphi 0, %s186
      %s201 = sphi 0, %s187
      %s207 = sphi 0, %s209
      %s210 = sphi 0, %s207
      %s211 = sphi 0, %s210
      %s227 = sphi 0, %s211
    $region4: #{tpu_custom_call.1} parent=1 // loop_header_branch
      %27 = sbr.rel (%p25) target = $region8
    $region5: #{tpu_custom_call.1} parent=1 // loop_body
      %s29 = ssub.s32 %s24, 1
      %s30 = ssub.s32 %s24, 2
      %s31 = sadd.s32 %s24, 1
      %s32 = ssub.s32 %s24, %s31
      %p33 = scmp.eq.s32.totalorder %s32, 0
      %s35 = sadd.s32 %s34, 1
      %s36 = scalar_select %p33, %s34, %s35
      %p39 = pneg %p33
      %p40 = scmp.eq.s32.totalorder %s24, 1
      %p41 = por %p39, %p40
      %p42 = scmp.ne.s32.totalorder %s34, %s37
      %p43 = scmp.eq.s32.totalorder %s24, 0
      %p44 = por %p42, %p43
      %p45 = scmp.ne.s32.totalorder %s34, %s37
      %p46 = scmp.eq.s32.totalorder %s29, 1
      %p47 = por %p45, %p46
      %p48 = scmp.ne.s32.totalorder %s37, %s38
      %p49 = scmp.eq.s32.totalorder %s29, 0
      %p50 = por %p48, %p49
      %p51 = scmp.ne.s32.totalorder %s37, %s38
      %p52 = scmp.eq.s32.totalorder %s30, 1
      %p53 = por %p51, %p52
      %p55 = scmp.ne.s32.totalorder %s38, %s54
      %p56 = scmp.eq.s32.totalorder %s30, 0
      %p57 = por %p55, %p56
      %s59 = sadd.s32 %s58, 1
      %p62 = scmp.eq.s32.totalorder %s24, 1
      %p63 = scmp.ne.s32.totalorder %s58, %s60
      %p64 = scmp.eq.s32.totalorder %s24, 0
      %p65 = por %p63, %p64
      %p66 = scmp.ne.s32.totalorder %s58, %s60
      %p67 = scmp.eq.s32.totalorder %s29, 1
      %p68 = por %p66, %p67
      %p69 = scmp.ne.s32.totalorder %s60, %s61
      %p70 = scmp.eq.s32.totalorder %s29, 0
      %p71 = por %p69, %p70
      %p72 = scmp.ne.s32.totalorder %s60, %s61
      %p73 = scmp.eq.s32.totalorder %s30, 1
      %p74 = por %p72, %p73
      %p76 = scmp.ne.s32.totalorder %s61, %s75
      %p77 = scmp.eq.s32.totalorder %s30, 0
      %p78 = por %p76, %p77
      %s80 = sadd.s32 %s79, 1
      %p83 = scmp.eq.s32.totalorder %s24, 1
      %p84 = scmp.ne.s32.totalorder %s79, %s81
      %p85 = scmp.eq.s32.totalorder %s24, 0
      %p86 = por %p84, %p85
      %p87 = scmp.ne.s32.totalorder %s79, %s81
      %p88 = scmp.eq.s32.totalorder %s29, 1
      %p89 = por %p87, %p88
      %p90 = scmp.ne.s32.totalorder %s81, %s82
      %p91 = scmp.eq.s32.totalorder %s29, 0
      %p92 = por %p90, %p91
      %p93 = scmp.ne.s32.totalorder %s81, %s82
      %p94 = scmp.eq.s32.totalorder %s30, 1
      %p95 = por %p93, %p94
      %p97 = scmp.ne.s32.totalorder %s82, %s96
      %p98 = scmp.eq.s32.totalorder %s30, 0
      %p99 = por %p97, %p98
      %s101 = sadd.s32 %s100, 1
      %p104 = scmp.eq.s32.totalorder %s24, 1
      %p105 = scmp.ne.s32.totalorder %s100, %s102
      %p106 = scmp.eq.s32.totalorder %s24, 0
      %p107 = por %p105, %p106
      %p108 = scmp.ne.s32.totalorder %s100, %s102
      %p109 = scmp.eq.s32.totalorder %s29, 1
      %p110 = por %p108, %p109
      %p111 = scmp.ne.s32.totalorder %s102, %s103
      %p112 = scmp.eq.s32.totalorder %s29, 0
      %p113 = por %p111, %p112
      %p114 = scmp.ne.s32.totalorder %s102, %s103
      %p115 = scmp.eq.s32.totalorder %s30, 1
      %p116 = por %p114, %p115
      %p118 = scmp.ne.s32.totalorder %s103, %s117
      %p119 = scmp.eq.s32.totalorder %s30, 0
      %p120 = por %p118, %p119
      %s122 = sadd.s32 %s121, 1
      %p125 = scmp.eq.s32.totalorder %s24, 1
      %p126 = scmp.ne.s32.totalorder %s121, %s123
      %p127 = scmp.eq.s32.totalorder %s24, 0
      %p128 = por %p126, %p127
      %p129 = scmp.ne.s32.totalorder %s121, %s123
      %p130 = scmp.eq.s32.totalorder %s29, 1
      %p131 = por %p129, %p130
      %p132 = scmp.ne.s32.totalorder %s123, %s124
      %p133 = scmp.eq.s32.totalorder %s29, 0
      %p134 = por %p132, %p133
      %p135 = scmp.ne.s32.totalorder %s123, %s124
      %p136 = scmp.eq.s32.totalorder %s30, 1
      %p137 = por %p135, %p136
      %p139 = scmp.ne.s32.totalorder %s124, %s138
      %p140 = scmp.eq.s32.totalorder %s30, 0
      %p141 = por %p139, %p140
      %s143 = sadd.s32 %s142, 1
      %p146 = scmp.eq.s32.totalorder %s24, 1
      %p147 = scmp.ne.s32.totalorder %s142, %s144
      %p148 = scmp.eq.s32.totalorder %s24, 0
      %p149 = por %p147, %p148
      %p150 = scmp.ne.s32.totalorder %s142, %s144
      %p151 = scmp.eq.s32.totalorder %s29, 1
      %p152 = por %p150, %p151
      %p153 = scmp.ne.s32.totalorder %s144, %s145
      %p154 = scmp.eq.s32.totalorder %s29, 0
      %p155 = por %p153, %p154
      %p156 = scmp.ne.s32.totalorder %s144, %s145
      %p157 = scmp.eq.s32.totalorder %s30, 1
      %p158 = por %p156, %p157
      %p160 = scmp.ne.s32.totalorder %s145, %s159
      %p161 = scmp.eq.s32.totalorder %s30, 0
      %p162 = por %p160, %p161
      %s164 = sadd.s32 %s163, 1
      %p167 = scmp.eq.s32.totalorder %s24, 1
      %p168 = scmp.ne.s32.totalorder %s163, %s165
      %p169 = scmp.eq.s32.totalorder %s24, 0
      %p170 = por %p168, %p169
      %p171 = scmp.ne.s32.totalorder %s163, %s165
      %p172 = scmp.eq.s32.totalorder %s29, 1
      %p173 = por %p171, %p172
      %p174 = scmp.ne.s32.totalorder %s165, %s166
      %p175 = scmp.eq.s32.totalorder %s29, 0
      %p176 = por %p174, %p175
      %p177 = scmp.ne.s32.totalorder %s165, %s166
      %p178 = scmp.eq.s32.totalorder %s30, 1
      %p179 = por %p177, %p178
      %p181 = scmp.ne.s32.totalorder %s166, %s180
      %p182 = scmp.eq.s32.totalorder %s30, 0
      %p183 = por %p181, %p182
      %s185 = sadd.s32 %s184, 1
      %p188 = scmp.eq.s32.totalorder %s24, 1
      %p189 = scmp.ne.s32.totalorder %s184, %s186
      %p190 = scmp.eq.s32.totalorder %s24, 0
      %p191 = por %p189, %p190
      %p192 = scmp.ne.s32.totalorder %s184, %s186
      %p193 = scmp.eq.s32.totalorder %s29, 1
      %p194 = por %p192, %p193
      %p195 = scmp.ne.s32.totalorder %s186, %s187
      %p196 = scmp.eq.s32.totalorder %s29, 0
      %p197 = por %p195, %p196
      %p198 = scmp.ne.s32.totalorder %s186, %s187
      %p199 = scmp.eq.s32.totalorder %s30, 1
      %p200 = por %p198, %p199
      %p202 = scmp.ne.s32.totalorder %s187, %s201
      %p203 = scmp.eq.s32.totalorder %s30, 0
      %p204 = por %p202, %p203
      %s205 = ssub.s32 %s24, %s31
      %p206 = scmp.eq.s32.totalorder %s205, 0
      %s208 = sadd.s32 %s207, 1
      %s209 = scalar_select %p206, %s207, %s208
      %p212 = pneg %p206
      %p213 = scmp.eq.s32.totalorder %s24, 1
      %p214 = por %p212, %p213
      %p215 = scmp.ne.s32.totalorder %s207, %s210
      %p216 = scmp.eq.s32.totalorder %s24, 0
      %p217 = por %p215, %p216
      %p218 = scmp.ne.s32.totalorder %s207, %s210
      %p219 = scmp.eq.s32.totalorder %s29, 1
      %p220 = por %p218, %p219
      %p221 = scmp.ne.s32.totalorder %s210, %s211
      %p222 = scmp.eq.s32.totalorder %s29, 0
      %p223 = por %p221, %p222
      %p224 = scmp.ne.s32.totalorder %s210, %s211
      %p225 = scmp.eq.s32.totalorder %s30, 1
      %p226 = por %p224, %p225
      %p228 = scmp.ne.s32.totalorder %s211, %s227
      %p229 = scmp.eq.s32.totalorder %s30, 0
      %p230 = por %p228, %p229
      %p231 = scmp.le.s32.totalorder 1, %s24
      %p232 = scmp.lt.s32.totalorder %s24, 3
      %p233 = pnand %p231, %p232
      %p234 = pneg %p233
      // Predicated region
      $region9: #{tpu_custom_call.1} parent=5 // pred_check
        _
      $region10: #{tpu_custom_call.1} parent=5 // pred_check_branch
        %236 = sbr.rel (%p233) target = $region12
      $region11: #{tpu_custom_call.1} parent=5 // pred_region
        %s237 = ssub.s32 %s24, 1
        // Predicated region
        $region13: #{tpu_custom_call.1} parent=11 // pred_check
          %p238 = pneg %p71
        $region14: #{tpu_custom_call.1} parent=11 // pred_check_branch
          %240 = sbr.rel (%p238) target = $region16
        $region15: #{tpu_custom_call.1} parent=11 // pred_region
          %s242 = ssub.s32 128, 128
          %243 = vsyncadd [#allocation6], %s242
          %s245 = sshll.u32 [#allocation5], 4
          %s246 = int_to_ptr.vmem [resolvable:$true] %s245
          %248 = dma.hbm_to_vmem [thread:$0]  %s1, 128, %s246, [#allocation6]
        $region16: #{tpu_custom_call.1} parent=11 // pred_fallthru
          _
        // Predicated region
        $region17: #{tpu_custom_call.1} parent=11 // pred_check
          %p249 = pneg %p92
        $region18: #{tpu_custom_call.1} parent=11 // pred_check_branch
          %251 = sbr.rel (%p249) target = $region20
        $region19: #{tpu_custom_call.1} parent=11 // pred_region
          %s253 = ssub.s32 128, 128
          %254 = vsyncadd [#allocation6], %s253
          %s256 = sshll.u32 [#allocation7], 4
          %s257 = int_to_ptr.vmem [resolvable:$true] %s256
          %259 = dma.hbm_to_vmem [thread:$0]  %s2, 128, %s257, [#allocation6]
        $region20: #{tpu_custom_call.1} parent=11 // pred_fallthru
          _
        // Predicated region
        $region21: #{tpu_custom_call.1} parent=11 // pred_check
          %p260 = pneg %p113
        $region22: #{tpu_custom_call.1} parent=11 // pred_check_branch
          %262 = sbr.rel (%p260) target = $region24
        $region23: #{tpu_custom_call.1} parent=11 // pred_region
          %s264 = ssub.s32 1152, 1152
          %265 = vsyncadd [#allocation9], %s264
          %s266 = sshll.u32 [#allocation8], 4
          %s267 = int_to_ptr.vmem [resolvable:$true] %s266
          %272 = dma.hbm_to_vmem [thread:$0]  %s3, 1152, %s267, [#allocation9], 128, 128, 8
        $region24: #{tpu_custom_call.1} parent=11 // pred_fallthru
          _
        // Predicated region
        $region25: #{tpu_custom_call.1} parent=11 // pred_check
          %p273 = pneg %p134
        $region26: #{tpu_custom_call.1} parent=11 // pred_check_branch
          %275 = sbr.rel (%p273) target = $region28
        $region27: #{tpu_custom_call.1} parent=11 // pred_region
          %s277 = ssub.s32 128, 128
          %278 = vsyncadd [#allocation9], %s277
          %s280 = sshll.u32 [#allocation10], 4
          %s281 = int_to_ptr.vmem [resolvable:$true] %s280
          %283 = dma.hbm_to_vmem [thread:$0]  %s4, 128, %s281, [#allocation9]
        $region28: #{tpu_custom_call.1} parent=11 // pred_fallthru
          _
        // Predicated region
        $region29: #{tpu_custom_call.1} parent=11 // pred_check
          %p284 = pneg %p155
        $region30: #{tpu_custom_call.1} parent=11 // pred_check_branch
          %286 = sbr.rel (%p284) target = $region32
        $region31: #{tpu_custom_call.1} parent=11 // pred_region
          %s288 = ssub.s32 128, 128
          %289 = vsyncadd [#allocation12], %s288
          %s291 = sshll.u32 [#allocation11], 4
          %s292 = int_to_ptr.vmem [resolvable:$true] %s291
          %294 = dma.hbm_to_vmem [thread:$0]  %s5, 128, %s292, [#allocation12]
        $region32: #{tpu_custom_call.1} parent=11 // pred_fallthru
          _
        // Predicated region
        $region33: #{tpu_custom_call.1} parent=11 // pred_check
          %p295 = pneg %p176
        $region34: #{tpu_custom_call.1} parent=11 // pred_check_branch
          %297 = sbr.rel (%p295) target = $region36
        $region35: #{tpu_custom_call.1} parent=11 // pred_region
          %s299 = ssub.s32 128, 128
          %300 = vsyncadd [#allocation12], %s299
          %s302 = sshll.u32 [#allocation13], 4
          %s303 = int_to_ptr.vmem [resolvable:$true] %s302
          %305 = dma.hbm_to_vmem [thread:$0]  %s6, 128, %s303, [#allocation12]
        $region36: #{tpu_custom_call.1} parent=11 // pred_fallthru
          _
        // Predicated region
        $region37: #{tpu_custom_call.1} parent=11 // pred_check
          %p306 = pneg %p197
        $region38: #{tpu_custom_call.1} parent=11 // pred_check_branch
          %308 = sbr.rel (%p306) target = $region40
        $region39: #{tpu_custom_call.1} parent=11 // pred_region
          %s310 = ssub.s32 288, 288
          %311 = vsyncadd [#allocation15], %s310
          %s312 = sshll.u32 [#allocation14], 4
          %s313 = int_to_ptr.vmem [resolvable:$true] %s312
          %318 = dma.hbm_to_vmem [thread:$0]  %s7, 288, %s313, [#allocation15], 32, 32, 2
        $region40: #{tpu_custom_call.1} parent=11 // pred_fallthru
          _
      $region12: #{tpu_custom_call.1} parent=5 // pred_fallthru
        _
      %p319 = scmp.lt.s32.totalorder %s24, 2
      // Predicated region
      $region41: #{tpu_custom_call.1} parent=5 // pred_check
        %p320 = pneg %p319
      $region42: #{tpu_custom_call.1} parent=5 // pred_check_branch
        %322 = sbr.rel (%p320) target = $region44
      $region43: #{tpu_custom_call.1} parent=5 // pred_region
        // Predicated region
        $region45: #{tpu_custom_call.1} parent=43 // pred_check
          %p323 = pneg %p44
        $region46: #{tpu_custom_call.1} parent=43 // pred_check_branch
          %325 = sbr.rel (%p323) target = $region48
        $region47: #{tpu_custom_call.1} parent=43 // pred_region
          %s326 = sand.u32 %s34, 1
          %s327 = scalar_lea.sflag [#allocation3], %s326
          %s328 = sand.u32 %s34, 1
          %s329 = smul.addr %s328, 8
          %s330 = scalar_lea.vmem [#allocation2], %s329
          %s332 = ssub.s32 128, 128
          %333 = vsyncadd %s327, %s332
          %s334 = smul.addr %s24, 2
          %s335 = smul.addr %s334, 64
          %s336 = scalar_lea.hbm %s0, %s335
          %s338 = sshll.u32 %s330, 4
          %s339 = int_to_ptr.vmem [resolvable:$true] %s338
          %341 = dma.hbm_to_vmem [thread:$0]  %s336, 128, %s339, %s327
        $region48: #{tpu_custom_call.1} parent=43 // pred_fallthru
          _
      $region44: #{tpu_custom_call.1} parent=5 // pred_fallthru
        _
      %p342 = scmp.le.s32.totalorder 1, %s24
      %p343 = scmp.lt.s32.totalorder %s24, 3
      %p344 = pnand %p342, %p343
      %p345 = pneg %p344
      // Predicated region
      $region49: #{tpu_custom_call.1} parent=5 // pred_check
        _
      $region50: #{tpu_custom_call.1} parent=5 // pred_check_branch
        %347 = sbr.rel (%p344) target = $region52
      $region51: #{tpu_custom_call.1} parent=5 // pred_region
        %s348 = ssub.s32 %s24, 1
        %s349 = sand.u32 %s37, 1
        %s350 = scalar_lea.sflag [#allocation3], %s349
        %s351 = sand.u32 %s37, 1
        %s352 = smul.addr %s351, 8
        %s353 = scalar_lea.vmem [#allocation2], %s352
        // Predicated region
        $region53: #{tpu_custom_call.1} parent=51 // pred_check
          %p354 = pneg %p50
        $region54: #{tpu_custom_call.1} parent=51 // pred_check_branch
          %356 = sbr.rel (%p354) target = $region56
        $region55: #{tpu_custom_call.1} parent=51 // pred_region
          %357 = dma.done %s350, 128
        $region56: #{tpu_custom_call.1} parent=51 // pred_fallthru
          _
        // Predicated region
        $region57: #{tpu_custom_call.1} parent=51 // pred_check
          %p358 = pneg %p71
        $region58: #{tpu_custom_call.1} parent=51 // pred_check_branch
          %360 = sbr.rel (%p358) target = $region60
        $region59: #{tpu_custom_call.1} parent=51 // pred_region
          %361 = dma.done [#allocation6], 128
        $region60: #{tpu_custom_call.1} parent=51 // pred_fallthru
          _
        // Predicated region
        $region61: #{tpu_custom_call.1} parent=51 // pred_check
          %p362 = pneg %p92
        $region62: #{tpu_custom_call.1} parent=51 // pred_check_branch
          %364 = sbr.rel (%p362) target = $region64
        $region63: #{tpu_custom_call.1} parent=51 // pred_region
          %365 = dma.done [#allocation6], 128
        $region64: #{tpu_custom_call.1} parent=51 // pred_fallthru
          _
        // Predicated region
        $region65: #{tpu_custom_call.1} parent=51 // pred_check
          %p366 = pneg %p113
        $region66: #{tpu_custom_call.1} parent=51 // pred_check_branch
          %368 = sbr.rel (%p366) target = $region68
        $region67: #{tpu_custom_call.1} parent=51 // pred_region
          %369 = dma.done [#allocation9], 1152
        $region68: #{tpu_custom_call.1} parent=51 // pred_fallthru
          _
        // Predicated region
        $region69: #{tpu_custom_call.1} parent=51 // pred_check
          %p370 = pneg %p134
        $region70: #{tpu_custom_call.1} parent=51 // pred_check_branch
          %372 = sbr.rel (%p370) target = $region72
        $region71: #{tpu_custom_call.1} parent=51 // pred_region
          %373 = dma.done [#allocation9], 128
        $region72: #{tpu_custom_call.1} parent=51 // pred_fallthru
          _
        // Predicated region
        $region73: #{tpu_custom_call.1} parent=51 // pred_check
          %p374 = pneg %p155
        $region74: #{tpu_custom_call.1} parent=51 // pred_check_branch
          %376 = sbr.rel (%p374) target = $region76
        $region75: #{tpu_custom_call.1} parent=51 // pred_region
          %377 = dma.done [#allocation12], 128
        $region76: #{tpu_custom_call.1} parent=51 // pred_fallthru
          _
        // Predicated region
        $region77: #{tpu_custom_call.1} parent=51 // pred_check
          %p378 = pneg %p176
        $region78: #{tpu_custom_call.1} parent=51 // pred_check_branch
          %380 = sbr.rel (%p378) target = $region80
        $region79: #{tpu_custom_call.1} parent=51 // pred_region
          %381 = dma.done [#allocation12], 128
        $region80: #{tpu_custom_call.1} parent=51 // pred_fallthru
          _
        // Predicated region
        $region81: #{tpu_custom_call.1} parent=51 // pred_check
          %p382 = pneg %p197
        $region82: #{tpu_custom_call.1} parent=51 // pred_check_branch
          %384 = sbr.rel (%p382) target = $region84
        $region83: #{tpu_custom_call.1} parent=51 // pred_region
          %385 = dma.done [#allocation15], 288
        $region84: #{tpu_custom_call.1} parent=51 // pred_fallthru
          _
        %s386 = sand.u32 %s37, 1
        %s387 = scalar_lea.sflag [#allocation3], %s386
        %s388 = sand.u32 %s37, 1
        %s389 = smul.addr %s388, 8
        %s390 = scalar_lea.vmem [#allocation2], %s389
        %p391 = pneg %p50
        %p392 = pneg %p47
        %p393 = pneg %p71
        %p394 = pneg %p68
        %p395 = pneg %p92
        %p396 = pneg %p89
        %p397 = pneg %p113
        %p398 = pneg %p110
        %p399 = pneg %p134
        %p400 = pneg %p131
        %p401 = pneg %p155
        %p402 = pneg %p152
        %p403 = pneg %p176
        %p404 = pneg %p173
        %p405 = pneg %p197
        %p406 = pneg %p194
        %p407 = pneg %p223
        %p408 = pneg %p220
        %s409 = sand.u32 %s210, 1
        %s410 = scalar_lea.sflag [#allocation4], %s409
        %s411 = sand.u32 %s210, 1
        %s412 = smul.addr %s411, 16
        %s413 = scalar_lea.vmem [#allocation16], %s412
        %v414 = vld [vmem:[%s353] sm:$0xff]
        %v415 = vld [vmem:[#allocation5] sm:$0xff]
        %v416 = vld [vmem:[#allocation7] sm:$0xff]
        %418 = vset.pattern.permute.xlu0 0
        %419 = vperm.xlu0 %418, %v416
        %v420 = vpop.permute.xlu0 %419
        %v423 = vcombine.high %v414, %v414
        %vm424 = vcmask 31744
        %v426 = vsel %vm424, %v415, 0
        %vm428 = vcmask 1043456
        %v429 = vsel %vm428, %v414, 0
        %v431 = vsel %vm428, %v423, 0
        %433 = vmatprep.subr.mxu0 %v431
        %434 = vmatpush1.msra.mxu0 %v429
        %435 = vmatprep.subr.mxu0 0.0
        %436 = vmatpush1.msra.mxu0 0.0
        %437 = vmatprep.subr.mxu0 0.0
        %438 = vmatpush1.msra.mxu0 0.0
        %439 = vmatprep.subr.mxu0 0.0
        %440 = vmatpush1.msra.mxu0 0.0
        %441 = vmatprep.subr.mxu0 0.0
        %442 = vmatpush1.msra.mxu0 0.0
        %443 = vmatprep.subr.mxu0 0.0
        %444 = vmatpush1.msra.mxu0 0.0
        %445 = vmatprep.subr.mxu0 0.0
        %446 = vmatpush1.msra.mxu0 0.0
        %447 = vmatprep.subr.mxu0 0.0
        %448 = vmatpush1.msra.mxu0 0.0
        %449 = vmatprep.subr.mxu0 0.0
        %450 = vmatpush1.msra.mxu0 0.0
        %451 = vmatprep.subr.mxu0 0.0
        %452 = vmatpush1.msra.mxu0 0.0
        %453 = vmatprep.subr.mxu0 0.0
        %454 = vmatpush1.msra.mxu0 0.0
        %455 = vmatprep.subr.mxu0 0.0
        %456 = vmatpush1.msra.mxu0 0.0
        %457 = vmatprep.subr.mxu0 0.0
        %458 = vmatpush1.msra.mxu0 0.0
        %459 = vmatprep.subr.mxu0 0.0
        %460 = vmatpush1.msra.mxu0 0.0
        %461 = vmatprep.subr.mxu0 0.0
        %462 = vmatpush1.msra.mxu0 0.0
        %463 = vmatprep.subr.mxu0 0.0
        %464 = vmatpush1.msra.mxu0 0.0
        %465 = vmatprep.subr.mxu0 0.0
        %466 = vmatpush1.msra.mxu0 0.0
        %467 = vmatprep.subr.mxu0 0.0
        %468 = vmatpush1.msra.mxu0 0.0
        %469 = vmatprep.subr.mxu0 0.0
        %470 = vmatpush1.msra.mxu0 0.0
        %471 = vmatprep.subr.mxu0 0.0
        %472 = vmatpush1.msra.mxu0 0.0
        %473 = vmatprep.subr.mxu0 0.0
        %474 = vmatpush1.msra.mxu0 0.0
        %475 = vmatprep.subr.mxu0 0.0
        %476 = vmatpush1.msra.mxu0 0.0
        %477 = vmatprep.subr.mxu0 0.0
        %478 = vmatpush1.msra.mxu0 0.0
        %479 = vmatprep.subr.mxu0 0.0
        %480 = vmatpush1.msra.mxu0 0.0
        %481 = vmatprep.subr.mxu0 0.0
        %482 = vmatpush1.msra.mxu0 0.0
        %483 = vmatprep.subr.mxu0 0.0
        %484 = vmatpush1.msra.mxu0 0.0
        %485 = vmatprep.subr.mxu0 0.0
        %486 = vmatpush1.msra.mxu0 0.0
        %487 = vmatprep.subr.mxu0 0.0
        %488 = vmatpush1.msra.mxu0 0.0
        %489 = vmatprep.subr.mxu0 0.0
        %490 = vmatpush1.msra.mxu0 0.0
        %491 = vmatprep.subr.mxu0 0.0
        %492 = vmatpush1.msra.mxu0 0.0
        %493 = vmatprep.subr.mxu0 0.0
        %494 = vmatpush1.msra.mxu0 0.0
        %495 = vmatprep.subr.mxu0 0.0
        %496 = vmatpush1.msra.mxu0 0.0
        %497 = vmatprep.mubr.f32.mxu0 0.0
        %498 = vmatmul.mubr.f32.gmra.mrb[0].mxu0 %v426
        %v499 = vpop.f32.mrb[0].mxu0
        %v500 = vadd.f32 %v420, %v499
        %v501 = vpop.f32.mrb[0].mxu0
        %v502 = vadd.f32 %v420, %v501
        %503 = vdwg.mxu0
        %v504 = vadd.f32 %v500, 3.0
        %v505 = vadd.f32 %v502, 3.0
        %v506 = vmax.f32 %v504, 0.0
        %v507 = vmax.f32 %v505, 0.0
        %v508 = vmin.f32 %v506, 6.0
        %v509 = vmin.f32 %v507, 6.0
        %v510 = vmul.f32 %v500, %v508
        %v511 = vmul.f32 %v502, %v509
        %v512 = vmul.f32 %v510, 0.16666667
        %v513 = vmul.f32 %v511, 0.16666667
        %s514 = scalar_lea.vmem [#allocation8], 32
        %v515 = vld [vmem:[%s514] sm:$0xff]
        %517 = vset.pattern.permute.xlu0 0
        %518 = vperm.xlu0 %517, %v515
        %v519 = vpop.permute.xlu0 %518
        %v521 = vmul.f32 %v512, %v519
        %v522 = vmul.f32 %v513, %v519
        %523 = vrot.lane.b32.xlu0 %v512, 17
        %v524 = vpop.permute.xlu0 %523
        %525 = vrot.lane.b32.xlu0 %v513, 17
        %v526 = vpop.permute.xlu0 %525
        %v527 = vlaneseq
        %v528 = vand.u32 %v527, 127
        %vm529 = vcmp.lt.s32.totalorder %v528, 17
        %v530 = vsel %vm529, %v524, %v526
        %v531 = vsel %vm529, %v526, %v524
        %v532 = vld [vmem:[#allocation14] sm:$0x3]
        %v534 = vlaneseq
        %v535 = vshrl.u32 %v534, 7
        %v536 = vsub.s32 0, %v535
        %v537 = vrot.slane %v532, %v536
        %v538 = vlaneseq
        %v539 = vshrl.u32 %v538, 7
        %v540 = vsub.s32 1, %v539
        %v541 = vrot.slane %v532, %v540
        %v544 = vmul.f32 %v531, %v537
        %v545 = vmul.f32 %v530, %v541
        %v546 = vld [vmem:[#allocation8] sm:$0xff]
        %548 = vset.pattern.permute.xlu0 0
        %549 = vperm.xlu0 %548, %v546
        %v550 = vpop.permute.xlu0 %549
        %v552 = vmul.f32 %v544, %v550
        %v553 = vmul.f32 %v545, %v550
        %v554 = vadd.f32 %v521, %v552
        %v555 = vadd.f32 %v522, %v553
        %556 = vrot.lane.b32.xlu0 %v512, 16
        %v557 = vpop.permute.xlu0 %556
        %558 = vrot.lane.b32.xlu0 %v513, 16
        %v559 = vpop.permute.xlu0 %558
        %vm560 = vcmp.lt.s32.totalorder %v528, 16
        %v561 = vsel %vm560, %v557, %v559
        %v562 = vsel %vm560, %v559, %v557
        %s563 = scalar_lea.vmem [#allocation14], 2
        %v564 = vld [vmem:[%s563] sm:$0x3]
        %v566 = vlaneseq
        %v567 = vshrl.u32 %v566, 7
        %v568 = vsub.s32 0, %v567
        %v569 = vrot.slane %v564, %v568
        %v570 = vlaneseq
        %v571 = vshrl.u32 %v570, 7
        %v572 = vsub.s32 1, %v571
        %v573 = vrot.slane %v564, %v572
        %v576 = vmul.f32 %v562, %v569
        %v577 = vmul.f32 %v561, %v573
        %s578 = scalar_lea.vmem [#allocation8], 8
        %v579 = vld [vmem:[%s578] sm:$0xff]
        %581 = vset.pattern.permute.xlu0 0
        %582 = vperm.xlu0 %581, %v579
        %v583 = vpop.permute.xlu0 %582
        %v585 = vmul.f32 %v576, %v583
        %v586 = vmul.f32 %v577, %v583
        %v587 = vadd.f32 %v554, %v585
        %v588 = vadd.f32 %v555, %v586
        %589 = vrot.lane.b32.xlu0 %v512, 15
        %v590 = vpop.permute.xlu0 %589
        %591 = vrot.lane.b32.xlu0 %v513, 15
        %v592 = vpop.permute.xlu0 %591
        %vm593 = vcmp.lt.s32.totalorder %v528, 15
        %v594 = vsel %vm593, %v590, %v592
        %v595 = vsel %vm593, %v592, %v590
        %s596 = scalar_lea.vmem [#allocation14], 4
        %v597 = vld [vmem:[%s596] sm:$0x3]
        %v599 = vlaneseq
        %v600 = vshrl.u32 %v599, 7
        %v601 = vsub.s32 0, %v600
        %v602 = vrot.slane %v597, %v601
        %v603 = vlaneseq
        %v604 = vshrl.u32 %v603, 7
        %v605 = vsub.s32 1, %v604
        %v606 = vrot.slane %v597, %v605
        %v609 = vmul.f32 %v595, %v602
        %v610 = vmul.f32 %v594, %v606
        %s611 = scalar_lea.vmem [#allocation8], 16
        %v612 = vld [vmem:[%s611] sm:$0xff]
        %614 = vset.pattern.permute.xlu0 0
        %615 = vperm.xlu0 %614, %v612
        %v616 = vpop.permute.xlu0 %615
        %v618 = vmul.f32 %v609, %v616
        %v619 = vmul.f32 %v610, %v616
        %v620 = vadd.f32 %v587, %v618
        %v621 = vadd.f32 %v588, %v619
        %622 = vrot.lane.b32.xlu0 %v512, 1
        %v623 = vpop.permute.xlu0 %622
        %624 = vrot.lane.b32.xlu0 %v513, 1
        %v625 = vpop.permute.xlu0 %624
        %vm626 = vcmp.lt.s32.totalorder %v528, 1
        %v627 = vsel %vm626, %v623, %v625
        %v628 = vsel %vm626, %v625, %v623
        %s629 = scalar_lea.vmem [#allocation14], 6
        %v630 = vld [vmem:[%s629] sm:$0x3]
        %v632 = vlaneseq
        %v633 = vshrl.u32 %v632, 7
        %v634 = vsub.s32 0, %v633
        %v635 = vrot.slane %v630, %v634
        %v636 = vlaneseq
        %v637 = vshrl.u32 %v636, 7
        %v638 = vsub.s32 1, %v637
        %v639 = vrot.slane %v630, %v638
        %v642 = vmul.f32 %v628, %v635
        %v643 = vmul.f32 %v627, %v639
        %s644 = scalar_lea.vmem [#allocation8], 24
        %v645 = vld [vmem:[%s644] sm:$0xff]
        %647 = vset.pattern.permute.xlu0 0
        %648 = vperm.xlu0 %647, %v645
        %v649 = vpop.permute.xlu0 %648
        %v651 = vmul.f32 %v642, %v649
        %v652 = vmul.f32 %v643, %v649
        %v653 = vadd.f32 %v620, %v651
        %v654 = vadd.f32 %v621, %v652
        %655 = vrot.lane.b32.xlu0 %v512, 127
        %v656 = vpop.permute.xlu0 %655
        %657 = vrot.lane.b32.xlu0 %v513, 127
        %v658 = vpop.permute.xlu0 %657
        %vm659 = vcmp.lt.s32.totalorder %v528, 127
        %v660 = vsel %vm659, %v656, %v658
        %v661 = vsel %vm659, %v658, %v656
        %s662 = scalar_lea.vmem [#allocation14], 10
        %v663 = vld [vmem:[%s662] sm:$0x3]
        %v665 = vlaneseq
        %v666 = vshrl.u32 %v665, 7
        %v667 = vsub.s32 0, %v666
        %v668 = vrot.slane %v663, %v667
        %v669 = vlaneseq
        %v670 = vshrl.u32 %v669, 7
        %v671 = vsub.s32 1, %v670
        %v672 = vrot.slane %v663, %v671
        %v675 = vmul.f32 %v660, %v668
        %v676 = vmul.f32 %v661, %v672
        %s677 = scalar_lea.vmem [#allocation8], 40
        %v678 = vld [vmem:[%s677] sm:$0xff]
        %680 = vset.pattern.permute.xlu0 0
        %681 = vperm.xlu0 %680, %v678
        %v682 = vpop.permute.xlu0 %681
        %v684 = vmul.f32 %v675, %v682
        %v685 = vmul.f32 %v676, %v682
        %v686 = vadd.f32 %v653, %v684
        %v687 = vadd.f32 %v654, %v685
        %688 = vrot.lane.b32.xlu0 %v512, 113
        %v689 = vpop.permute.xlu0 %688
        %690 = vrot.lane.b32.xlu0 %v513, 113
        %v691 = vpop.permute.xlu0 %690
        %vm692 = vcmp.lt.s32.totalorder %v528, 113
        %v693 = vsel %vm692, %v689, %v691
        %v694 = vsel %vm692, %v691, %v689
        %s695 = scalar_lea.vmem [#allocation14], 12
        %v696 = vld [vmem:[%s695] sm:$0x3]
        %v698 = vlaneseq
        %v699 = vshrl.u32 %v698, 7
        %v700 = vsub.s32 0, %v699
        %v701 = vrot.slane %v696, %v700
        %v702 = vlaneseq
        %v703 = vshrl.u32 %v702, 7
        %v704 = vsub.s32 1, %v703
        %v705 = vrot.slane %v696, %v704
        %v708 = vmul.f32 %v693, %v701
        %v709 = vmul.f32 %v694, %v705
        %s710 = scalar_lea.vmem [#allocation8], 48
        %v711 = vld [vmem:[%s710] sm:$0xff]
        %713 = vset.pattern.permute.xlu0 0
        %714 = vperm.xlu0 %713, %v711
        %v715 = vpop.permute.xlu0 %714
        %v717 = vmul.f32 %v708, %v715
        %v718 = vmul.f32 %v709, %v715
        %v719 = vadd.f32 %v686, %v717
        %v720 = vadd.f32 %v687, %v718
        %721 = vrot.lane.b32.xlu0 %v512, 112
        %v722 = vpop.permute.xlu0 %721
        %723 = vrot.lane.b32.xlu0 %v513, 112
        %v724 = vpop.permute.xlu0 %723
        %vm725 = vcmp.lt.s32.totalorder %v528, 112
        %v726 = vsel %vm725, %v722, %v724
        %v727 = vsel %vm725, %v724, %v722
        %s728 = scalar_lea.vmem [#allocation14], 14
        %v729 = vld [vmem:[%s728] sm:$0x3]
        %v731 = vlaneseq
        %v732 = vshrl.u32 %v731, 7
        %v733 = vsub.s32 0, %v732
        %v734 = vrot.slane %v729, %v733
        %v735 = vlaneseq
        %v736 = vshrl.u32 %v735, 7
        %v737 = vsub.s32 1, %v736
        %v738 = vrot.slane %v729, %v737
        %v741 = vmul.f32 %v726, %v734
        %v742 = vmul.f32 %v727, %v738
        %s743 = scalar_lea.vmem [#allocation8], 56
        %v744 = vld [vmem:[%s743] sm:$0xff]
        %746 = vset.pattern.permute.xlu0 0
        %747 = vperm.xlu0 %746, %v744
        %v748 = vpop.permute.xlu0 %747
        %v750 = vmul.f32 %v741, %v748
        %v751 = vmul.f32 %v742, %v748
        %v752 = vadd.f32 %v719, %v750
        %v753 = vadd.f32 %v720, %v751
        %754 = vrot.lane.b32.xlu0 %v512, 111
        %v755 = vpop.permute.xlu0 %754
        %756 = vrot.lane.b32.xlu0 %v513, 111
        %v757 = vpop.permute.xlu0 %756
        %vm758 = vcmp.lt.s32.totalorder %v528, 111
        %v759 = vsel %vm758, %v755, %v757
        %v760 = vsel %vm758, %v757, %v755
        %s761 = scalar_lea.vmem [#allocation14], 16
        %v762 = vld [vmem:[%s761] sm:$0x3]
        %v764 = vlaneseq
        %v765 = vshrl.u32 %v764, 7
        %v766 = vsub.s32 0, %v765
        %v767 = vrot.slane %v762, %v766
        %v768 = vlaneseq
        %v769 = vshrl.u32 %v768, 7
        %v770 = vsub.s32 1, %v769
        %v771 = vrot.slane %v762, %v770
        %v774 = vmul.f32 %v759, %v767
        %v775 = vmul.f32 %v760, %v771
        %s776 = scalar_lea.vmem [#allocation8], 64
        %v777 = vld [vmem:[%s776] sm:$0xff]
        %779 = vset.pattern.permute.xlu0 0
        %780 = vperm.xlu0 %779, %v777
        %v781 = vpop.permute.xlu0 %780
        %v783 = vmul.f32 %v774, %v781
        %v784 = vmul.f32 %v775, %v781
        %v785 = vadd.f32 %v752, %v783
        %v786 = vadd.f32 %v753, %v784
        %v787 = vld [vmem:[#allocation10] sm:$0xff]
        %789 = vset.pattern.permute.xlu0 0
        %790 = vperm.xlu0 %789, %v787
        %v791 = vpop.permute.xlu0 %790
        %v793 = vadd.f32 %v785, %v791
        %v794 = vadd.f32 %v786, %v791
        %v795 = vadd.f32 %v793, 3.0
        %v796 = vadd.f32 %v794, 3.0
        %v797 = vmax.f32 %v795, 0.0
        %v798 = vmax.f32 %v796, 0.0
        %v799 = vmin.f32 %v797, 6.0
        %v800 = vmin.f32 %v798, 6.0
        %v801 = vmul.f32 %v793, %v799
        %v802 = vmul.f32 %v794, %v800
        %v803 = vmul.f32 %v801, 0.16666667
        %v804 = vmul.f32 %v802, 0.16666667
        %v805 = vld [vmem:[#allocation11] sm:$0xff]
        %v806 = vld [vmem:[#allocation13] sm:$0xff]
        %808 = vset.pattern.permute.xlu0 0
        %809 = vperm.xlu0 %808, %v806
        %v810 = vpop.permute.xlu0 %809
        %vm812 = vcmask 64512
        %v814 = vsel %vm812, %v805, 0
        %816 = vmatprep.subr.mxu0 %v804
        %817 = vmatpush1.msra.mxu0 %v803
        %818 = vmatprep.subr.mxu0 0.0
        %819 = vmatpush1.msra.mxu0 0.0
        %820 = vmatprep.subr.mxu0 0.0
        %821 = vmatpush1.msra.mxu0 0.0
        %822 = vmatprep.subr.mxu0 0.0
        %823 = vmatpush1.msra.mxu0 0.0
        %824 = vmatprep.subr.mxu0 0.0
        %825 = vmatpush1.msra.mxu0 0.0
        %826 = vmatprep.subr.mxu0 0.0
        %827 = vmatpush1.msra.mxu0 0.0
        %828 = vmatprep.subr.mxu0 0.0
        %829 = vmatpush1.msra.mxu0 0.0
        %830 = vmatprep.subr.mxu0 0.0
        %831 = vmatpush1.msra.mxu0 0.0
        %832 = vmatprep.subr.mxu0 0.0
        %833 = vmatpush1.msra.mxu0 0.0
        %834 = vmatprep.subr.mxu0 0.0
        %835 = vmatpush1.msra.mxu0 0.0
        %836 = vmatprep.subr.mxu0 0.0
        %837 = vmatpush1.msra.mxu0 0.0
        %838 = vmatprep.subr.mxu0 0.0
        %839 = vmatpush1.msra.mxu0 0.0
        %840 = vmatprep.subr.mxu0 0.0
        %841 = vmatpush1.msra.mxu0 0.0
        %842 = vmatprep.subr.mxu0 0.0
        %843 = vmatpush1.msra.mxu0 0.0
        %844 = vmatprep.subr.mxu0 0.0
        %845 = vmatpush1.msra.mxu0 0.0
        %846 = vmatprep.subr.mxu0 0.0
        %847 = vmatpush1.msra.mxu0 0.0
        %848 = vmatprep.subr.mxu0 0.0
        %849 = vmatpush1.msra.mxu0 0.0
        %850 = vmatprep.subr.mxu0 0.0
        %851 = vmatpush1.msra.mxu0 0.0
        %852 = vmatprep.subr.mxu0 0.0
        %853 = vmatpush1.msra.mxu0 0.0
        %854 = vmatprep.subr.mxu0 0.0
        %855 = vmatpush1.msra.mxu0 0.0
        %856 = vmatprep.subr.mxu0 0.0
        %857 = vmatpush1.msra.mxu0 0.0
        %858 = vmatprep.subr.mxu0 0.0
        %859 = vmatpush1.msra.mxu0 0.0
        %860 = vmatprep.subr.mxu0 0.0
        %861 = vmatpush1.msra.mxu0 0.0
        %862 = vmatprep.subr.mxu0 0.0
        %863 = vmatpush1.msra.mxu0 0.0
        %864 = vmatprep.subr.mxu0 0.0
        %865 = vmatpush1.msra.mxu0 0.0
        %866 = vmatprep.subr.mxu0 0.0
        %867 = vmatpush1.msra.mxu0 0.0
        %868 = vmatprep.subr.mxu0 0.0
        %869 = vmatpush1.msra.mxu0 0.0
        %870 = vmatprep.subr.mxu0 0.0
        %871 = vmatpush1.msra.mxu0 0.0
        %872 = vmatprep.subr.mxu0 0.0
        %873 = vmatpush1.msra.mxu0 0.0
        %874 = vmatprep.subr.mxu0 0.0
        %875 = vmatpush1.msra.mxu0 0.0
        %876 = vmatprep.subr.mxu0 0.0
        %877 = vmatpush1.msra.mxu0 0.0
        %878 = vmatprep.subr.mxu0 0.0
        %879 = vmatpush1.msra.mxu0 0.0
        %880 = vmatprep.mubr.f32.mxu0 0.0
        %881 = vmatmul.mubr.f32.gmra.mrb[0].mxu0 %v814
        %v882 = vpop.f32.mrb[0].mxu0
        %v883 = vadd.f32 %v810, %v882
        %v884 = vpop.f32.mrb[0].mxu0
        %v885 = vadd.f32 %v810, %v884
        %886 = vdwg.mxu0
        %887 = vst [vmem:[%s413] sm:$0xff] %v883
        %888 = vst [vmem:[%s413 + $0x8] sm:$0xff] %v885
        %s889 = sand.u32 %s210, 1
        %s890 = scalar_lea.sflag [#allocation4], %s889
        %s891 = sand.u32 %s210, 1
        %s892 = smul.addr %s891, 16
        %s893 = scalar_lea.vmem [#allocation16], %s892
        // Predicated region
        $region85: #{tpu_custom_call.1} parent=51 // pred_check
          %p894 = pneg %p220
        $region86: #{tpu_custom_call.1} parent=51 // pred_check_branch
          %896 = sbr.rel (%p894) target = $region88
        $region87: #{tpu_custom_call.1} parent=51 // pred_region
          %s898 = ssub.s32 256, 256
          %899 = vsyncadd %s890, %s898
          %s900 = smul.addr %s29, 2
          %s901 = smul.addr %s900, 128
          %s902 = scalar_lea.hbm %s8, %s901
          %s904 = sshll.u32 %s893, 4
          %s905 = int_to_ptr.vmem [resolvable:$true] %s904
          %907 = dma.vmem_to_hbm [thread:$0]  %s905, 256, %s902, %s890
        $region88: #{tpu_custom_call.1} parent=51 // pred_fallthru
          _
      $region52: #{tpu_custom_call.1} parent=5 // pred_fallthru
        _
      %p908 = scmp.le.s32.totalorder 2, %s24
      // Predicated region
      $region89: #{tpu_custom_call.1} parent=5 // pred_check
        %p909 = pneg %p908
      $region90: #{tpu_custom_call.1} parent=5 // pred_check_branch
        %911 = sbr.rel (%p909) target = $region92
      $region91: #{tpu_custom_call.1} parent=5 // pred_region
        %s912 = ssub.s32 %s24, 2
        // Predicated region
        $region93: #{tpu_custom_call.1} parent=91 // pred_check
          %p913 = pneg %p226
        $region94: #{tpu_custom_call.1} parent=91 // pred_check_branch
          %915 = sbr.rel (%p913) target = $region96
        $region95: #{tpu_custom_call.1} parent=91 // pred_region
          %s916 = sand.u32 %s211, 1
          %s917 = scalar_lea.sflag [#allocation4], %s916
          %s918 = sand.u32 %s211, 1
          %s919 = smul.addr %s918, 16
          %s920 = scalar_lea.vmem [#allocation16], %s919
          %921 = dma.done %s917, 256
        $region96: #{tpu_custom_call.1} parent=91 // pred_fallthru
          _
      $region92: #{tpu_custom_call.1} parent=5 // pred_fallthru
        _
    $region6: #{tpu_custom_call.1} parent=1 // loop_footer
      %s28 = sadd.s32 1, %s24
    $region7: #{tpu_custom_call.1} parent=1 // loop_footer_branch
      %23 = sbr.rel target = $region3
    $region8: #{tpu_custom_call.1} parent=1 // loop_exit
      _
    %922 = vsyncpa [#allocation3], 1
    %s923 = scalar_lea.sflag [#allocation3], 1
    %924 = vsyncpa %s923, 1
    %925 = vsyncpa [#allocation6], 1
    %926 = vsyncpa [#allocation9], 1
    %927 = vsyncpa [#allocation12], 1
    %928 = vsyncpa [#allocation15], 1
    %929 = vsyncpa [#allocation4], 1
    %s930 = scalar_lea.sflag [#allocation4], 1
    %931 = vsyncpa %s930, 1

</llo_original>
